<compile_context>
chip_gen: v7x
topology: tpu7x:2x2x1
jax: 0.10.0
libtpu: 0.0.40
codegen_flags: <defaults>
</compile_context>

<pallas_src>
from functools import partial

import numpy as np
import jax
import jax.numpy as jnp
from jax.experimental import pallas as pl
from jax.experimental.pallas import tpu as pltpu


# ------------------------------ Pallas kernel ------------------------------

def _smooth_kernel(x_ref, o_ref, *, H, W):
    """Separable 3x3 blur with replication padding on a (tile, H*W) block."""
    HW = H * W
    x = x_ref[...].astype(jnp.float32)                       # (tile, H*W)

    # ---- vertical pass: (1,2,1)/4 along rows, replicate at top/bottom ----
    # up[f]   = x[f-W]  (row 0 uses itself)
    # down[f] = x[f+W]  (row H-1 uses itself)
    up = jnp.concatenate([x[:, :W], x[:, :HW - W]], axis=1)
    down = jnp.concatenate([x[:, W:], x[:, HW - W:]], axis=1)
    v = (up + 2.0 * x + down) * 0.25

    # ---- horizontal pass: (1,2,1)/4 along cols, replicate at left/right ----
    col = jax.lax.broadcasted_iota(jnp.int32, v.shape, 1) % W
    left_raw = jnp.concatenate([v[:, :1], v[:, :HW - 1]], axis=1)   # v[f-1]
    right_raw = jnp.concatenate([v[:, 1:], v[:, HW - 1:]], axis=1)  # v[f+1]
    left = jnp.where(col == 0, v, left_raw)        # col 0: replicate itself
    right = jnp.where(col == W - 1, v, right_raw)  # col W-1: replicate itself
    out = (left + 2.0 * v + right) * 0.25

    o_ref[...] = out.astype(o_ref.dtype)


def _pick_tile(bc, hw, target_bytes=2 * 1024 * 1024):
    """Largest block of images per grid step.

    Returns either the full B*C extent (exempt from the sublane-of-8 rule) or a
    multiple of 8 that divides B*C and keeps the f32 block under target_bytes.
    """
    if bc * hw * 4 <= target_bytes:
        return bc
    cap = max(8, target_bytes // (hw * 4))
    best = None
    t = 8
    while t <= min(bc, cap):
        if bc % t == 0:
            best = t
        t += 8
    return best if best is not None else bc


@jax.jit
def smooth(x):
    """Equivalent of PyTorch Smooth.forward: depthwise 3x3 blur, edge-padded."""
    B, C, H, W = x.shape
    BC, HW = B * C, H * W
    xf = x.reshape(BC, HW)                     # lane-dense: spatial on lanes

    tile = _pick_tile(BC, HW)
    grid = (BC // tile,)

    out = pl.pallas_call(
        partial(_smooth_kernel, H=H, W=W),
        out_shape=jax.ShapeDtypeStruct((BC, HW), x.dtype),
        grid=grid,
        in_specs=[pl.BlockSpec((tile, HW), lambda i: (i, 0))],
        out_specs=pl.BlockSpec((tile, HW), lambda i: (i, 0)),
        compiler_params=pltpu.CompilerParams(
            dimension_semantics=("parallel",)),
    )(xf)
    return out.reshape(B, C, H, W)


# ------------------------------ pure-JAX reference ------------------------------

def smooth_ref(x):
    B, C, H, W = x.shape
    k = jnp.asarray([[1., 2., 1.], [2., 4., 2.], [1., 2., 1.]], jnp.float32) / 16.0
    xp = jnp.pad(x, ((0, 0), (0, 0), (1, 1), (1, 1)), mode='edge')
    out = jnp.zeros_like(x)
    for di in range(3):
        for dj in range(3):
            out = out + k[di, dj] * xp[:, :, di:di + H, dj:dj + W]
    return out


# ------------------------------ test ------------------------------

if __name__ == "__main__":
    key = jax.random.PRNGKey(0)

    # Small shape consistent with the module (B, C, H, W).
    k1, k2 = jax.random.split(key)
    x1 = jax.random.normal(k1, (2, 4, 16, 16), dtype=jnp.float32)
    y1 = jax.block_until_ready(smooth(x1))
    r1 = jax.block_until_ready(smooth_ref(x1))
    assert y1.shape == x1.shape, y1.shape
    assert bool(jnp.isfinite(y1).all())
    np.testing.assert_allclose(np.asarray(y1), np.asarray(r1), rtol=1e-5, atol=1e-5)

    # Larger shape to exercise multi-block grid tiling.
    x2 = jax.random.normal(k2, (4, 256, 32, 32), dtype=jnp.float32)
    y2 = jax.block_until_ready(smooth(x2))
    r2 = jax.block_until_ready(smooth_ref(x2))
    assert y2.shape == x2.shape, y2.shape
    np.testing.assert_allclose(np.asarray(y2), np.asarray(r2), rtol=1e-5, atol=1e-5)

    print("KERNEL_OK")
</pallas_src>

<mosaic_0001>
module attributes {stable_mosaic.version = 11 : i64} {
  func.func @_smooth_kernel(%arg0: i32, %arg1: memref<8x256xf32, #tpu.memory_space<vmem>>, %arg2: memref<8x256xf32, #tpu.memory_space<vmem>>) attributes {dimension_semantics = [#tpu.dimension_semantics<parallel>], iteration_bounds = array<i64: 1>, scalar_prefetch = 0 : i64, scratch_operands = 0 : i64, tpu.core_type = #tpu.core_type<tc>, window_params = [{transform_indices = @transform_0, window_bounds = array<i64: 8, 256>}, {transform_indices = @transform_1, window_bounds = array<i64: 8, 256>}]} {
    %c0 = arith.constant 0 : index
    %c0_0 = arith.constant 0 : index
    %0 = vector.load %arg1[%c0, %c0_0] : memref<8x256xf32, #tpu.memory_space<vmem>>, vector<8x256xf32>
    %1 = vector.extract_strided_slice %0 {offsets = [0, 0], sizes = [8, 16], strides = [1, 1]} : vector<8x256xf32> to vector<8x16xf32>
    %2 = vector.extract_strided_slice %0 {offsets = [0, 0], sizes = [8, 240], strides = [1, 1]} : vector<8x256xf32> to vector<8x240xf32>
    %3 = tpu.concatenate %1, %2 in 1 : vector<8x16xf32>, vector<8x240xf32> -> vector<8x256xf32>
    %4 = vector.extract_strided_slice %0 {offsets = [0, 16], sizes = [8, 240], strides = [1, 1]} : vector<8x256xf32> to vector<8x240xf32>
    %5 = vector.extract_strided_slice %0 {offsets = [0, 240], sizes = [8, 16], strides = [1, 1]} : vector<8x256xf32> to vector<8x16xf32>
    %6 = tpu.concatenate %4, %5 in 1 : vector<8x240xf32>, vector<8x16xf32> -> vector<8x256xf32>
    %cst = arith.constant 2.000000e+00 : f32
    %7 = vector.broadcast %cst : f32 to vector<8x256xf32>
    %8 = arith.mulf %7, %0 : vector<8x256xf32>
    %9 = arith.addf %3, %8 : vector<8x256xf32>
    %10 = arith.addf %9, %6 : vector<8x256xf32>
    %cst_1 = arith.constant 2.500000e-01 : f32
    %11 = vector.broadcast %cst_1 : f32 to vector<8x256xf32>
    %12 = arith.mulf %10, %11 : vector<8x256xf32>
    %13 = tpu.iota {dimensions = array<i32: 1>} : vector<8x256xi32>
    %c16_i32 = arith.constant 16 : i32
    %c0_i32 = arith.constant 0 : i32
    %14 = arith.cmpi eq, %c16_i32, %c0_i32 : i32
    %c1_i32 = arith.constant 1 : i32
    %15 = arith.select %14, %c1_i32, %c16_i32 : i32
    %16 = vector.broadcast %15 : i32 to vector<8x256xi32>
    %17 = arith.remsi %13, %16 : vector<8x256xi32>
    %c0_i32_2 = arith.constant 0 : i32
    %18 = vector.broadcast %c0_i32_2 : i32 to vector<8x256xi32>
    %19 = arith.cmpi ne, %17, %18 : vector<8x256xi32>
    %c0_i32_3 = arith.constant 0 : i32
    %20 = vector.broadcast %c0_i32_3 : i32 to vector<8x256xi32>
    %21 = arith.cmpi slt, %17, %20 : vector<8x256xi32>
    %c0_i32_4 = arith.constant 0 : i32
    %22 = arith.cmpi slt, %15, %c0_i32_4 : i32
    %23 = vector.broadcast %22 : i1 to vector<8x256xi1>
    %24 = vector.broadcast %23 : vector<8x256xi1> to vector<8x256xi1>
    %25 = arith.xori %21, %24 : vector<8x256xi1>
    %26 = arith.andi %25, %19 : vector<8x256xi1>
    %27 = vector.broadcast %15 : i32 to vector<8x256xi32>
    %28 = arith.addi %17, %27 : vector<8x256xi32>
    %29 = arith.select %26, %28, %17 : vector<8x256xi1>, vector<8x256xi32>
    %30 = vector.extract_strided_slice %12 {offsets = [0, 0], sizes = [8, 1], strides = [1, 1]} : vector<8x256xf32> to vector<8x1xf32>
    %31 = vector.extract_strided_slice %12 {offsets = [0, 0], sizes = [8, 255], strides = [1, 1]} : vector<8x256xf32> to vector<8x255xf32>
    %32 = tpu.concatenate %30, %31 in 1 : vector<8x1xf32>, vector<8x255xf32> -> vector<8x256xf32>
    %33 = vector.extract_strided_slice %12 {offsets = [0, 1], sizes = [8, 255], strides = [1, 1]} : vector<8x256xf32> to vector<8x255xf32>
    %34 = vector.extract_strided_slice %12 {offsets = [0, 255], sizes = [8, 1], strides = [1, 1]} : vector<8x256xf32> to vector<8x1xf32>
    %35 = tpu.concatenate %33, %34 in 1 : vector<8x255xf32>, vector<8x1xf32> -> vector<8x256xf32>
    %c0_i32_5 = arith.constant 0 : i32
    %36 = vector.broadcast %c0_i32_5 : i32 to vector<8x256xi32>
    %37 = arith.cmpi eq, %29, %36 : vector<8x256xi32>
    %38 = arith.select %37, %12, %32 : vector<8x256xi1>, vector<8x256xf32>
    %c15_i32 = arith.constant 15 : i32
    %39 = vector.broadcast %c15_i32 : i32 to vector<8x256xi32>
    %40 = arith.cmpi eq, %29, %39 : vector<8x256xi32>
    %41 = arith.select %40, %12, %35 : vector<8x256xi1>, vector<8x256xf32>
    %cst_6 = arith.constant 2.000000e+00 : f32
    %42 = vector.broadcast %cst_6 : f32 to vector<8x256xf32>
    %43 = arith.mulf %42, %12 : vector<8x256xf32>
    %44 = arith.addf %38, %43 : vector<8x256xf32>
    %45 = arith.addf %44, %41 : vector<8x256xf32>
    %cst_7 = arith.constant 2.500000e-01 : f32
    %46 = vector.broadcast %cst_7 : f32 to vector<8x256xf32>
    %47 = arith.mulf %45, %46 : vector<8x256xf32>
    %c0_8 = arith.constant 0 : index
    %c0_9 = arith.constant 0 : index
    %48 = vector.load %arg2[%c0_8, %c0_9] : memref<8x256xf32, #tpu.memory_space<vmem>>, vector<8x256xf32>
    tpu.vector_store %arg2[%c0_8, %c0_9], %47 {strides = array<i32>} : memref<8x256xf32, #tpu.memory_space<vmem>>, vector<8x256xf32>,
    return
  }
  func.func @transform_0(%arg0: i32) -> (i32, i32) {
    %c0_i32 = arith.constant 0 : i32
    %c0_i32_0 = arith.constant 0 : i32
    return %arg0, %c0_i32 : i32, i32
  }
  func.func @transform_1(%arg0: i32) -> (i32, i32) {
    %c0_i32 = arith.constant 0 : i32
    %c0_i32_0 = arith.constant 0 : i32
    return %arg0, %c0_i32 : i32, i32
  }
}

</mosaic_0001>

<llo_original>
// kernel: smooth.1
$region0: #{smooth.1}
  #allocation0 [shape = 'u32[]', space=smem, size = 0x4, offset = 0x4, fixed_abs, tag = 'smem constant byte address 0x4 - core index']
  #allocation1 [shape = 'u32[144,128]{1,0:T(1,128)}', space=vmem, size = 0x12000, scoped, tag = 'internal scratch']
  %s0 = inlined_call_operand.vmem [shape: f32[8,256], index: 0, kind: input, shape index: {}]
  %s1 = inlined_call_operand.vmem [shape: f32[8,256], index: 1, kind: output, shape index: {}]
  %s2 = sld [smem:[#allocation0]]
  $region14: #{smooth.1} parent=0
    _
  %s4 = ssub.s32 1, %s2
  %s5 = scalar_select 0, %s4, %s2
  // Predicated region
  $region2: #{smooth.1} parent=0 // pred_check
    _
  $region3: #{smooth.1} parent=0 // pred_check_branch
    %7 = sbr.rel (0) target = $region5
  $region4: #{smooth.1} parent=0 // pred_region
    _
  $region5: #{smooth.1} parent=0 // pred_fallthru
    _
  %v8 = vld [vmem:[%s0] sm:$0xff]
  %v9 = vld [vmem:[%s0 + $0x8] sm:$0xff]
  %12 = vrot.lane.b32.xlu0 %v8, 16
  %v13 = vpop.permute.xlu0 %12
  %14 = vrot.lane.b32.xlu0 %v9, 16
  %v15 = vpop.permute.xlu0 %14
  %vm16 = vcmask 130048
  %v17 = vsel %vm16, %v13, %v15
  %v20 = vsel %vm16, %v8, %v13
  %21 = vrot.lane.b32.xlu0 %v8, 112
  %v22 = vpop.permute.xlu0 %21
  %23 = vrot.lane.b32.xlu0 %v9, 112
  %v24 = vpop.permute.xlu0 %23
  %vm25 = vcmask 916480
  %v26 = vsel %vm25, %v22, %v24
  %v29 = vsel %vm25, %v24, %v9
  %v30 = vmul.f32 %v8, 2.0
  %v31 = vmul.f32 %v9, 2.0
  %v32 = vadd.f32 %v20, %v30
  %v33 = vadd.f32 %v17, %v31
  %v34 = vadd.f32 %v32, %v26
  %v35 = vadd.f32 %v33, %v29
  %v36 = vmul.f32 %v34, 0.25
  %v37 = vmul.f32 %v35, 0.25
  %v38 = vlaneseq
  %v39 = vand.u32 %v38, 127
  %v40 = vadd.s32 %v39, 128
  %vm41 = vcmp.lt.s32.totalorder %v39, 0
  %v42 = vsub.s32 0, %v39
  %v43 = vsel %vm41, %v42, %v39
  %v44 = vshrl.u32 %v43, 4
  %v45 = vand.u32 %v43, 15
  %v46 = vsub.s32 0, %v45
  %v47 = vsel %vm41, %v46, %v45
  %vm48 = vcmp.lt.s32.totalorder %v40, 0
  %v49 = vsub.s32 0, %v40
  %v50 = vsel %vm48, %v49, %v40
  %v51 = vshrl.u32 %v50, 4
  %v52 = vand.u32 %v50, 15
  %v53 = vsub.s32 0, %v52
  %v54 = vsel %vm48, %v53, %v52
  %vm55 = vcmp.ne.s32.totalorder %v47, 0
  %vm56 = vcmp.ne.s32.totalorder %v54, 0
  %vm57 = vcmp.lt.s32.totalorder %v47, 0
  %vm58 = vcmp.lt.s32.totalorder %v54, 0
  %vm59 = vmand %vm57, %vm55
  %vm60 = vmand %vm58, %vm56
  %v61 = vadd.s32 %v47, 16
  %v62 = vadd.s32 %v54, 16
  %v63 = vsel %vm59, %v61, %v47
  %v64 = vsel %vm60, %v62, %v54
  %67 = vrot.lane.b32.xlu0 %v36, 1
  %v68 = vpop.permute.xlu0 %67
  %69 = vrot.lane.b32.xlu0 %v37, 1
  %v70 = vpop.permute.xlu0 %69
  %vm71 = vcmask 7168
  %v72 = vsel %vm71, %v68, %v70
  %v75 = vsel %vm71, %v36, %v68
  %76 = vrot.lane.b32.xlu0 %v36, 127
  %v77 = vpop.permute.xlu0 %76
  %78 = vrot.lane.b32.xlu0 %v37, 127
  %v79 = vpop.permute.xlu0 %78
  %vm80 = vcmask 1039360
  %v81 = vsel %vm80, %v77, %v79
  %v84 = vsel %vm80, %v79, %v37
  %vm85 = vcmp.eq.s32.totalorder %v63, 0
  %vm86 = vcmp.eq.s32.totalorder %v64, 0
  %v87 = vsel %vm85, %v36, %v75
  %v88 = vsel %vm86, %v37, %v72
  %vm89 = vcmp.eq.s32.totalorder %v63, 15
  %vm90 = vcmp.eq.s32.totalorder %v64, 15
  %v91 = vsel %vm89, %v36, %v81
  %v92 = vsel %vm90, %v37, %v84
  %v93 = vmul.f32 %v36, 2.0
  %v94 = vmul.f32 %v37, 2.0
  %v95 = vadd.f32 %v87, %v93
  %v96 = vadd.f32 %v88, %v94
  %v97 = vadd.f32 %v95, %v91
  %v98 = vadd.f32 %v96, %v92
  %v99 = vmul.f32 %v97, 0.25
  %v100 = vmul.f32 %v98, 0.25
  %101 = vst [vmem:[%s1] sm:$0xff] %v99
  %102 = vst [vmem:[%s1 + $0x8] sm:$0xff] %v100
  // Predicated region
  $region6: #{smooth.1} parent=0 // pred_check
    _
  $region7: #{smooth.1} parent=0 // pred_check_branch
    %104 = sbr.rel (0) target = $region9
  $region8: #{smooth.1} parent=0 // pred_region
    _
  $region9: #{smooth.1} parent=0 // pred_fallthru
    _
  // Predicated region
  $region10: #{smooth.1} parent=0 // pred_check
    _
  $region11: #{smooth.1} parent=0 // pred_check_branch
    %106 = sbr.rel (0) target = $region13
  $region12: #{smooth.1} parent=0 // pred_region
    _
  $region13: #{smooth.1} parent=0 // pred_fallthru
    _

</llo_original>
